<compile_context>
chip_gen: v7x
topology: tpu7x:2x2x1
jax: 0.10.0
libtpu: 0.0.40
codegen_flags: <defaults>
</compile_context>

<pallas_src>
import functools

import jax
import jax.numpy as jnp
import numpy as np
from jax.experimental import pallas as pl
from jax.experimental.pallas import tpu as pltpu


def _vmem_limit_bytes():
    """~75% of this generation's physical VMEM (96 MiB v5e/v6e, 48 MiB v7x)."""
    cap = 64 * 1024 * 1024
    try:
        info = pltpu.get_tpu_info()
        cap = int(getattr(info, "vmem_capacity_bytes", cap) or cap)
    except Exception:
        pass
    return (cap * 3) // 4


def _pick_tile(dim, target, align):
    """Largest `align`-aligned tile <= target that divides `dim`, else the full dim."""
    if dim <= target:
        return dim
    t = (target // align) * align
    while t >= align:
        if dim % t == 0:
            return t
        t -= align
    return dim  # full dim is always a legal block shape


# ---------------------------------------------------------------------------
# Kernel 1: dense / Linear layer  y = x @ W + b   (W stored as (in, out))
# Tiled over (M, N, K); bf16 (or f32) MXU matmul, f32 VMEM accumulator.
# ---------------------------------------------------------------------------
def _linear_kernel(compute_dtype, x_ref, w_ref, b_ref, o_ref, acc_ref):
    @pl.when(pl.program_id(2) == 0)
    def _():
        acc_ref[...] = jnp.zeros_like(acc_ref)

    acc_ref[...] += jnp.dot(
        x_ref[...].astype(compute_dtype),
        w_ref[...].astype(compute_dtype),
        preferred_element_type=jnp.float32,
    )

    @pl.when(pl.program_id(2) == pl.num_programs(2) - 1)
    def _():
        o_ref[...] = (acc_ref[...] + b_ref[...].astype(jnp.float32)).astype(o_ref.dtype)


def linear(x2d, w, b, *, out_dtype=None, compute_dtype=jnp.bfloat16,
           tm=512, tn=512, tk=1024):
    """x2d: (M, K), w: (K, N), b: (N,) -> (M, N) in out_dtype (default x2d.dtype)."""
    M, K = x2d.shape
    Kw, N = w.shape
    assert K == Kw
    out_dtype = x2d.dtype if out_dtype is None else out_dtype
    tm = _pick_tile(M, tm, 16)   # 16-sublane alignment covers bf16 and f32 blocks
    tn = _pick_tile(N, tn, 128)
    tk = _pick_tile(K, tk, 128)
    grid = (M // tm, N // tn, K // tk)
    vmem_limit = _vmem_limit_bytes()
    return pl.pallas_call(
        functools.partial(_linear_kernel, compute_dtype),
        grid=grid,
        out_shape=jax.ShapeDtypeStruct((M, N), out_dtype),
        in_specs=[
            pl.BlockSpec((tm, tk), lambda i, j, k: (i, k)),
            pl.BlockSpec((tk, tn), lambda i, j, k: (k, j)),
            pl.BlockSpec((1, tn), lambda i, j, k: (0, j)),
        ],
        out_specs=pl.BlockSpec((tm, tn), lambda i, j, k: (i, j)),
        scratch_shapes=[pltpu.VMEM((tm, tn), jnp.float32)],
        compiler_params=pltpu.CompilerParams(
            dimension_semantics=("parallel", "parallel", "arbitrary"),
            vmem_limit_bytes=vmem_limit,
        ),
    )(x2d, w, b.reshape(1, N).astype(jnp.float32))


# ---------------------------------------------------------------------------
# Kernel 2: scaled dot-product attention.
# Q is already pre-scaled (1/sqrt(d_k) folded into the Q projection), so:
#   s = q @ k^T ; attn = softmax(s, axis=-1) ; out = attn @ v
# One grid step processes a block of `hb_blk` (head*batch) slices at once.
# Matmuls run in `compute_dtype` on the MXU with f32 accumulation; the softmax
# (max/exp/sum/divide) stays in f32 (v5e's VPU/EUP have no bf16).
# ---------------------------------------------------------------------------
def _sdpa_kernel(compute_dtype, q_ref, k_ref, v_ref, attn_ref, out_ref):
    q = q_ref[...].astype(compute_dtype)   # (hb_blk, n_q, d_k) -- already scaled
    k = k_ref[...].astype(compute_dtype)   # (hb_blk, n_k, d_k)

    s = jnp.einsum("bqd,bkd->bqk", q, k, preferred_element_type=jnp.float32)
    # numerically-stable softmax over the last axis (matches torch softmax dim=2)
    m = jnp.max(s, axis=-1, keepdims=True)
    e = jnp.exp(s - m)
    denom = jnp.sum(e, axis=-1, keepdims=True)
    attn = e / denom                        # exact divide: returned rows sum to 1

    attn_ref[...] = attn.astype(attn_ref.dtype)
    out = jnp.einsum("bqk,bkd->bqd",
                     attn.astype(compute_dtype),
                     v_ref[...].astype(compute_dtype),
                     preferred_element_type=jnp.float32)
    out_ref[...] = out.astype(out_ref.dtype)
    # TODO(synk): optional boolean `mask` (masked_fill with -inf before the
    # softmax) is not wired in; the reference forward is exercised with mask=None.


def scaled_dot_product_attention(q, k, v, *, compute_dtype=jnp.bfloat16,
                                 vmem_budget=None):
    """q: (HB, n_q, d_k) pre-scaled, k: (HB, n_k, d_k), v: (HB, n_v, d_v)."""
    HB, n_q, d_k = q.shape
    _, n_k, _ = k.shape
    _, n_v, d_v = v.shape
    if vmem_budget is None:
        vmem_budget = _vmem_limit_bytes() // 2

    in_b = q.dtype.itemsize
    # per-(head*batch)-slice VMEM: double-buffered in/out blocks + f32 temporaries
    per_slice = (2 * in_b * (n_q * d_k + n_k * d_k + n_v * d_v + n_q * d_v)
                 + 2 * 4 * n_q * n_k     # double-buffered f32 attn output block
                 + 4 * 4 * n_q * n_k)    # f32 scores / exp / prob temporaries
    cap = max(1, vmem_budget // max(per_slice, 1))
    if HB >= 2:
        cap = min(cap, max(1, HB // 2))  # >=2 grid steps keeps both v7x TCs busy
    hb_blk = 1
    for t in range(min(HB, cap), 0, -1):
        if HB % t == 0:
            hb_blk = t
            break
    # TODO(synk): for very long n_k a single slice can exceed the VMEM budget;
    # that needs a kv-block grid axis with online softmax (not required while
    # the full attn matrix must be returned at these sizes).

    return pl.pallas_call(
        functools.partial(_sdpa_kernel, compute_dtype),
        grid=(HB // hb_blk,),
        out_shape=(
            jax.ShapeDtypeStruct((HB, n_q, n_k), jnp.float32),
            jax.ShapeDtypeStruct((HB, n_q, d_v), q.dtype),
        ),
        in_specs=[
            pl.BlockSpec((hb_blk, n_q, d_k), lambda b: (b, 0, 0)),
            pl.BlockSpec((hb_blk, n_k, d_k), lambda b: (b, 0, 0)),
            pl.BlockSpec((hb_blk, n_v, d_v), lambda b: (b, 0, 0)),
        ],
        out_specs=(
            pl.BlockSpec((hb_blk, n_q, n_k), lambda b: (b, 0, 0)),
            pl.BlockSpec((hb_blk, n_q, d_v), lambda b: (b, 0, 0)),
        ),
        compiler_params=pltpu.CompilerParams(
            dimension_semantics=("parallel",),
            vmem_limit_bytes=_vmem_limit_bytes(),
        ),
    )(q, k, v)


# ---------------------------------------------------------------------------
# MultiHeadAttention wrapper (parameter setup + head reshapes in plain JAX)
# ---------------------------------------------------------------------------
class MultiHeadAttentionPallas:
    def __init__(self, n_head, d_k_, d_v_, d_k, d_v, d_o, key,
                 compute_dtype=jnp.bfloat16):
        self.n_head, self.d_k, self.d_v = n_head, d_k, d_v
        self.compute_dtype = compute_dtype
        self.scale = float(np.power(d_k, 0.5))
        ks = jax.random.split(key, 8)

        def init_linear(kw, kb, fan_in, fan_out):
            # deterministic init in the spirit of nn.Linear (uniform +/- 1/sqrt(fan_in))
            bound = 1.0 / np.sqrt(fan_in)
            w = jax.random.uniform(kw, (fan_in, fan_out), jnp.float32, -bound, bound)
            b = jax.random.uniform(kb, (fan_out,), jnp.float32, -bound, bound)
            return w, b

        # f32 master weights (used by the pure-JAX reference)
        self.wq, self.bq = init_linear(ks[0], ks[1], d_k_, n_head * d_k)
        self.wk, self.bk = init_linear(ks[2], ks[3], d_k_, n_head * d_k)
        self.wv, self.bv = init_linear(ks[4], ks[5], d_v_, n_head * d_v)
        self.wo, self.bo = init_linear(ks[6], ks[7], n_head * d_v, d_o)

        # Kernel-side copies: 1/sqrt(d_k) folded into the Q projection, weights
        # stored in the MXU compute dtype (halves their HBM traffic); biases f32.
        cd = compute_dtype
        self.wq_c = (self.wq / self.scale).astype(cd)
        self.bq_s = self.bq / self.scale
        self.wk_c = self.wk.astype(cd)
        self.wv_c = self.wv.astype(cd)
        self.wo_c = self.wo.astype(cd)

        # Pre-fused projection weights for self-attention / shared-KV calls.
        if d_k_ == d_v_:
            self.wqkv_c = jnp.concatenate([self.wq_c, self.wk_c, self.wv_c], axis=1)
            self.bqkv = jnp.concatenate([self.bq_s, self.bk, self.bv])
            self.wkv_c = jnp.concatenate([self.wk_c, self.wv_c], axis=1)
            self.bkv = jnp.concatenate([self.bk, self.bv])
        else:
            self.wqkv_c = self.bqkv = self.wkv_c = self.bkv = None

    def __call__(self, q, k, v):
        cd = self.compute_dtype
        n_head, d_k, d_v = self.n_head, self.d_k, self.d_v
        batch, n_q, d_q_ = q.shape
        _, n_k, d_k_ = k.shape
        _, n_v, d_v_ = v.shape
        nh_dk = n_head * d_k

        q2 = q.reshape(batch * n_q, d_q_)
        k2 = k.reshape(batch * n_k, d_k_)
        v2 = v.reshape(batch * n_v, d_v_)

        # Linear projections (tiled Pallas matmuls); Q is pre-scaled. When the
        # same tensor is passed for q/k/v (or k/v) use a single fused matmul so
        # the activation is read from HBM once.
        if (q is k) and (k is v) and self.wqkv_c is not None:
            fused = linear(q2, self.wqkv_c, self.bqkv, out_dtype=cd, compute_dtype=cd)
            qp = fused[:, :nh_dk]
            kp = fused[:, nh_dk:2 * nh_dk]
            vp = fused[:, 2 * nh_dk:]
        elif (k is v) and self.wkv_c is not None:
            qp = linear(q2, self.wq_c, self.bq_s, out_dtype=cd, compute_dtype=cd)
            fused = linear(k2, self.wkv_c, self.bkv, out_dtype=cd, compute_dtype=cd)
            kp = fused[:, :nh_dk]
            vp = fused[:, nh_dk:]
        else:
            qp = linear(q2, self.wq_c, self.bq_s, out_dtype=cd, compute_dtype=cd)
            kp = linear(k2, self.wk_c, self.bk, out_dtype=cd, compute_dtype=cd)
            vp = linear(v2, self.wv_c, self.bv, out_dtype=cd, compute_dtype=cd)

        # split heads: (batch, n, h, d) -> (h, batch, n, d) -> (h*batch, n, d)
        qh = jnp.transpose(qp.reshape(batch, n_q, n_head, d_k), (2, 0, 1, 3)).reshape(-1, n_q, d_k)
        kh = jnp.transpose(kp.reshape(batch, n_k, n_head, d_k), (2, 0, 1, 3)).reshape(-1, n_k, d_k)
        vh = jnp.transpose(vp.reshape(batch, n_v, n_head, d_v), (2, 0, 1, 3)).reshape(-1, n_v, d_v)

        attn, out = scaled_dot_product_attention(qh, kh, vh, compute_dtype=cd)

        # merge heads: (h*batch, n_q, d_v) -> (batch, n_q, h*d_v)
        out = jnp.transpose(out.reshape(n_head, batch, n_q, d_v),
                            (1, 2, 0, 3)).reshape(batch, n_q, n_head * d_v)

        # output projection (back to f32, matching the torch module's dtype)
        out = linear(out.reshape(batch * n_q, n_head * d_v), self.wo_c, self.bo,
                     out_dtype=jnp.float32, compute_dtype=cd).reshape(batch, n_q, -1)
        return attn, out


# ---------------------------------------------------------------------------
# Pure-JAX f32 reference (mirrors the PyTorch module exactly)
# ---------------------------------------------------------------------------
def reference(mha, q, k, v):
    n_head, d_k, d_v = mha.n_head, mha.d_k, mha.d_v
    batch, n_q, _ = q.shape
    _, n_k, _ = k.shape
    _, n_v, _ = v.shape
    qp = q @ mha.wq + mha.bq
    kp = k @ mha.wk + mha.bk
    vp = v @ mha.wv + mha.bv
    qh = jnp.transpose(qp.reshape(batch, n_q, n_head, d_k), (2, 0, 1, 3)).reshape(-1, n_q, d_k)
    kh = jnp.transpose(kp.reshape(batch, n_k, n_head, d_k), (2, 0, 1, 3)).reshape(-1, n_k, d_k)
    vh = jnp.transpose(vp.reshape(batch, n_v, n_head, d_v), (2, 0, 1, 3)).reshape(-1, n_v, d_v)
    u = jnp.einsum("bqd,bkd->bqk", qh, kh) / mha.scale
    attn = jax.nn.softmax(u, axis=-1)
    out = jnp.einsum("bqk,bkd->bqd", attn, vh)
    out = jnp.transpose(out.reshape(n_head, batch, n_q, d_v), (1, 2, 0, 3)).reshape(batch, n_q, n_head * d_v)
    out = out @ mha.wo + mha.bo
    return attn, out


if __name__ == "__main__":
    # small shapes consistent with the module's forward
    batch, n_seq = 2, 8
    d_k_, d_v_ = 16, 16          # input feature dims
    n_head, d_k, d_v, d_o = 2, 8, 8, 16

    key = jax.random.PRNGKey(0)
    kq, kk, kv, kparam = jax.random.split(key, 4)
    q = jax.random.normal(kq, (batch, n_seq, d_k_), jnp.float32)
    k = jax.random.normal(kk, (batch, n_seq, d_k_), jnp.float32)
    v = jax.random.normal(kv, (batch, n_seq, d_v_), jnp.float32)

    mha = MultiHeadAttentionPallas(n_head, d_k_, d_v_, d_k, d_v, d_o, kparam)

    # cross-attention (distinct q/k/v)
    attn, out = mha(q, k, v)
    jax.block_until_ready((attn, out))
    attn_ref, out_ref = reference(mha, q, k, v)
    # attention rows must sum to exactly 1 (exact reciprocal in the kernel)
    np.testing.assert_allclose(np.asarray(attn).sum(-1), 1.0, rtol=0, atol=1e-5)
    # loose tolerances cover bf16 weight/activation rounding on the MXU path
    np.testing.assert_allclose(np.asarray(attn), np.asarray(attn_ref), rtol=2e-2, atol=2e-2)
    np.testing.assert_allclose(np.asarray(out), np.asarray(out_ref), rtol=2e-2, atol=5e-2)

    # self-attention (q is k is v) exercises the fused-QKV projection path
    attn_s, out_s = mha(q, q, q)
    jax.block_until_ready((attn_s, out_s))
    attn_sr, out_sr = reference(mha, q, q, q)
    np.testing.assert_allclose(np.asarray(attn_s), np.asarray(attn_sr), rtol=2e-2, atol=2e-2)
    np.testing.assert_allclose(np.asarray(out_s), np.asarray(out_sr), rtol=2e-2, atol=5e-2)

    print("KERNEL_OK")
</pallas_src>

<mosaic_0001>
module attributes {stable_mosaic.version = 11 : i64} {
  func.func @_linear_kernel(%arg0: i32, %arg1: i32, %arg2: i32, %arg3: memref<16x16xf32, #tpu.memory_space<vmem>>, %arg4: memref<16x16xbf16, #tpu.memory_space<vmem>>, %arg5: memref<1x16xf32, #tpu.memory_space<vmem>>, %arg6: memref<16x16xbf16, #tpu.memory_space<vmem>>, %arg7: memref<16x16xf32, #tpu.memory_space<vmem>>) attributes {dimension_semantics = [#tpu.dimension_semantics<parallel>, #tpu.dimension_semantics<parallel>, #tpu.dimension_semantics<arbitrary>], iteration_bounds = array<i64: 1, 1, 1>, scalar_prefetch = 0 : i64, scratch_operands = 1 : i64, tpu.core_type = #tpu.core_type<tc>, window_params = [{transform_indices = @transform_0, window_bounds = array<i64: 16, 16>}, {transform_indices = @transform_1, window_bounds = array<i64: 16, 16>}, {transform_indices = @transform_2, window_bounds = array<i64: 1, 16>}, {transform_indices = @transform_3, window_bounds = array<i64: 16, 16>}]} {
    %c0_i32 = arith.constant 0 : i32
    %0 = arith.cmpi eq, %arg2, %c0_i32 : i32
    %1 = arith.extui %0 : i1 to i32
    %c0_i32_0 = arith.constant 0 : i32
    %2 = arith.cmpi ne, %1, %c0_i32_0 : i32
    scf.if %2 {
      %cst_10 = arith.constant 0.000000e+00 : f32
      %13 = vector.broadcast %cst_10 : f32 to vector<16x16xf32>
      %c0_11 = arith.constant 0 : index
      %c0_12 = arith.constant 0 : index
      %14 = vector.load %arg7[%c0_11, %c0_12] : memref<16x16xf32, #tpu.memory_space<vmem>>, vector<16x16xf32>
      tpu.vector_store %arg7[%c0_11, %c0_12], %13 {strides = array<i32>} : memref<16x16xf32, #tpu.memory_space<vmem>>, vector<16x16xf32>,
    } else {
    }
    %c0 = arith.constant 0 : index
    %c0_1 = arith.constant 0 : index
    %3 = vector.load %arg7[%c0, %c0_1] : memref<16x16xf32, #tpu.memory_space<vmem>>, vector<16x16xf32>
    %c0_2 = arith.constant 0 : index
    %c0_3 = arith.constant 0 : index
    %4 = vector.load %arg3[%c0_2, %c0_3] : memref<16x16xf32, #tpu.memory_space<vmem>>, vector<16x16xf32>
    %5 = arith.truncf %4 : vector<16x16xf32> to vector<16x16xbf16>
    %c0_4 = arith.constant 0 : index
    %c0_5 = arith.constant 0 : index
    %6 = vector.load %arg4[%c0_4, %c0_5] : memref<16x16xbf16, #tpu.memory_space<vmem>>, vector<16x16xbf16>
    %cst = arith.constant dense<0.000000e+00> : vector<16x16xf32>
    %7 = tpu.matmul %5, %6, %cst {dimension_numbers = #tpu.dot_dimension_numbers<[1], [0], [0], [1], [0, 0, 1, 1], [], []>} : vector<16x16xbf16>, vector<16x16xbf16>, vector<16x16xf32> -> vector<16x16xf32>
    %8 = arith.addf %3, %7 : vector<16x16xf32>
    %c0_6 = arith.constant 0 : index
    %c0_7 = arith.constant 0 : index
    %9 = vector.load %arg7[%c0_6, %c0_7] : memref<16x16xf32, #tpu.memory_space<vmem>>, vector<16x16xf32>
    tpu.vector_store %arg7[%c0_6, %c0_7], %8 {strides = array<i32>} : memref<16x16xf32, #tpu.memory_space<vmem>>, vector<16x16xf32>,
    %c0_i32_8 = arith.constant 0 : i32
    %10 = arith.cmpi eq, %arg2, %c0_i32_8 : i32
    %11 = arith.extui %10 : i1 to i32
    %c0_i32_9 = arith.constant 0 : i32
    %12 = arith.cmpi ne, %11, %c0_i32_9 : i32
    scf.if %12 {
      %c0_10 = arith.constant 0 : index
      %c0_11 = arith.constant 0 : index
      %13 = vector.load %arg7[%c0_10, %c0_11] : memref<16x16xf32, #tpu.memory_space<vmem>>, vector<16x16xf32>
      %c0_12 = arith.constant 0 : index
      %c0_13 = arith.constant 0 : index
      %14 = vector.load %arg5[%c0_12, %c0_13] : memref<1x16xf32, #tpu.memory_space<vmem>>, vector<1x16xf32>
      %15 = vector.broadcast %14 : vector<1x16xf32> to vector<16x16xf32>
      %16 = arith.addf %13, %15 : vector<16x16xf32>
      %17 = arith.truncf %16 : vector<16x16xf32> to vector<16x16xbf16>
      %c0_14 = arith.constant 0 : index
      %c0_15 = arith.constant 0 : index
      %18 = vector.load %arg6[%c0_14, %c0_15] : memref<16x16xbf16, #tpu.memory_space<vmem>>, vector<16x16xbf16>
      tpu.vector_store %arg6[%c0_14, %c0_15], %17 {strides = array<i32>} : memref<16x16xbf16, #tpu.memory_space<vmem>>, vector<16x16xbf16>,
    } else {
    }
    return
  }
  func.func @transform_0(%arg0: i32, %arg1: i32, %arg2: i32) -> (i32, i32) {
    %c0_i32 = arith.constant 0 : i32
    return %arg0, %arg2 : i32, i32
  }
  func.func @transform_1(%arg0: i32, %arg1: i32, %arg2: i32) -> (i32, i32) {
    %c0_i32 = arith.constant 0 : i32
    return %arg2, %arg1 : i32, i32
  }
  func.func @transform_2(%arg0: i32, %arg1: i32, %arg2: i32) -> (i32, i32) {
    %c0_i32 = arith.constant 0 : i32
    %c0_i32_0 = arith.constant 0 : i32
    return %c0_i32, %arg1 : i32, i32
  }
  func.func @transform_3(%arg0: i32, %arg1: i32, %arg2: i32) -> (i32, i32) {
    %c0_i32 = arith.constant 0 : i32
    return %arg0, %arg1 : i32, i32
  }
}

</mosaic_0001>

<llo_original>
// kernel: tpu_custom_call.1
$region0: #{tpu_custom_call.1}
  #allocation0 [shape = 'u32[]', space=smem, size = 0x4, offset = 0x4, fixed_abs, tag = 'smem constant byte address 0x4 - core index']
  #allocation1 [shape = 'u32[144,128]{1,0:T(1,128)}', space=vmem, size = 0x12000, scoped, tag = 'internal scratch']
  #allocation2 [shape = 'f32[16,16]{1,0:T(8,128)}', space=vmem, size = 0x2000, scoped, tag = 'scratch operand']
  %s0 = inlined_call_operand.hbm [shape: f32[16,16], index: 0, kind: input, shape index: {}]
  %s1 = inlined_call_operand.hbm [shape: bf16[16,16], index: 1, kind: input, shape index: {}]
  %s2 = inlined_call_operand.vmem [shape: f32[1,16], index: 2, kind: input, shape index: {}]
  %s3 = inlined_call_operand.hbm [shape: bf16[16,16], index: 3, kind: output, shape index: {}]
  %s4 = sld [smem:[#allocation0]]
  $region38: #{tpu_custom_call.1} parent=0
    _
  %s6 = ssub.s32 1, %s4
  %s7 = scalar_select 0, %s6, %s4
  $region1: #{tpu_custom_call.1} parent=0
    #allocation3 [shape = 'u8[8192]{0}', space=vmem, size = 0x2000, scoped, tag = 'input window, operand 0, single buffered']
    #allocation4 [shape = 's32[1]{0}', space=sflag, size = 0x4, scoped, tag = 'scoped memory for tpu_custom_call.1']
    #allocation5 [shape = 's32[1]{0}', space=sflag, size = 0x4, scoped, tag = 'scoped memory for tpu_custom_call.1']
    #allocation6 [shape = 'u8[4096]{0}', space=vmem, size = 0x1000, scoped, tag = 'input window, operand 1, single buffered']
    #allocation7 [shape = 's32[1]{0}', space=sflag, size = 0x4, scoped, tag = 'scoped memory for tpu_custom_call.1']
    #allocation8 [shape = 'u8[4096]{0}', space=vmem, size = 0x1000, scoped, tag = 'output window, operand 0, single buffered']
    %8 = vsyncpa [#allocation4], 0
    %9 = vsyncpa [#allocation7], 0
    %10 = vsyncpa [#allocation5], 0
    // Predicated region
    $region2: #{tpu_custom_call.1} parent=1 // pred_check
      _
    $region3: #{tpu_custom_call.1} parent=1 // pred_check_branch
      %12 = sbr.rel (0) target = $region5
    $region4: #{tpu_custom_call.1} parent=1 // pred_region
      %s14 = ssub.s32 256, 256
      %15 = vsyncadd [#allocation4], %s14
      %s16 = sshll.u32 [#allocation3], 4
      %s17 = int_to_ptr.vmem [resolvable:$true] %s16
      %22 = dma.hbm_to_vmem [thread:$0]  %s0, 256, %s17, [#allocation4], 128, 128, 8
    $region5: #{tpu_custom_call.1} parent=1 // pred_fallthru
      _
    // Predicated region
    $region6: #{tpu_custom_call.1} parent=1 // pred_check
      _
    $region7: #{tpu_custom_call.1} parent=1 // pred_check_branch
      %24 = sbr.rel (0) target = $region9
    $region8: #{tpu_custom_call.1} parent=1 // pred_region
      %s26 = ssub.s32 128, 128
      %27 = vsyncadd [#allocation7], %s26
      %s28 = sshll.u32 [#allocation6], 4
      %s29 = int_to_ptr.vmem [resolvable:$true] %s28
      %34 = dma.hbm_to_vmem [thread:$0]  %s1, 128, %s29, [#allocation7], 64, 64, 4
    $region9: #{tpu_custom_call.1} parent=1 // pred_fallthru
      _
    // Predicated region
    $region10: #{tpu_custom_call.1} parent=1 // pred_check
      _
    $region11: #{tpu_custom_call.1} parent=1 // pred_check_branch
      %36 = sbr.rel (0) target = $region13
    $region12: #{tpu_custom_call.1} parent=1 // pred_region
      _
    $region13: #{tpu_custom_call.1} parent=1 // pred_fallthru
      _
    // Predicated region
    $region14: #{tpu_custom_call.1} parent=1 // pred_check
      _
    $region15: #{tpu_custom_call.1} parent=1 // pred_check_branch
      %38 = sbr.rel (0) target = $region17
    $region16: #{tpu_custom_call.1} parent=1 // pred_region
      %39 = dma.done [#allocation4], 256
    $region17: #{tpu_custom_call.1} parent=1 // pred_fallthru
      _
    // Predicated region
    $region18: #{tpu_custom_call.1} parent=1 // pred_check
      _
    $region19: #{tpu_custom_call.1} parent=1 // pred_check_branch
      %41 = sbr.rel (0) target = $region21
    $region20: #{tpu_custom_call.1} parent=1 // pred_region
      %42 = dma.done [#allocation7], 128
    $region21: #{tpu_custom_call.1} parent=1 // pred_fallthru
      _
    %p44 = scmp.eq.s32.totalorder 0, 0
    // Predicated region
    $region22: #{tpu_custom_call.1} parent=1 // pred_check
      %p45 = pneg %p44
    $region23: #{tpu_custom_call.1} parent=1 // pred_check_branch
      %47 = sbr.rel (%p45) target = $region25
    $region24: #{tpu_custom_call.1} parent=1 // pred_region
      %vm48 = vcmask 130048
      %49 = vst.msk [vmem:[#allocation2] sm:$0xff] %vm48, 0.0
      %50 = vst.msk [vmem:[#allocation2 + $0x8] sm:$0xff] %vm48, 0.0
    $region25: #{tpu_custom_call.1} parent=1 // pred_fallthru
      _
    %v51 = vld [vmem:[#allocation2] sm:$0xff]
    %v52 = vld [vmem:[#allocation2 + $0x8] sm:$0xff]
    %v53 = vld [vmem:[#allocation3] sm:$0xff]
    %v54 = vld [vmem:[#allocation3 + $0x8] sm:$0xff]
    %v55 = vpack.c.bf16 %v54, %v53
    %v56 = vld [vmem:[#allocation6] sm:$0xf]
    %v57 = vld [vmem:[#allocation6 + $0x4] sm:$0xf]
    %v60 = vunpack.c.l.b16 %v56
    %v61 = vunpack.c.l.b16 %v57
    %v62 = vpack.c.b16 %v61, %v60
    %vm64 = vcmask 130048
    %v66 = vsel %vm64, %v55, 0
    %68 = vmatprep.subr.bf16.mxu0 0
    %69 = vmatpush1.bf16.msra.mxu0 %v62
    %70 = vmatprep.subr.bf16.mxu0 0
    %71 = vmatpush1.bf16.msra.mxu0 0
    %72 = vmatprep.subr.bf16.mxu0 0
    %73 = vmatpush1.bf16.msra.mxu0 0
    %74 = vmatprep.subr.bf16.mxu0 0
    %75 = vmatpush1.bf16.msra.mxu0 0
    %76 = vmatprep.subr.bf16.mxu0 0
    %77 = vmatpush1.bf16.msra.mxu0 0
    %78 = vmatprep.subr.bf16.mxu0 0
    %79 = vmatpush1.bf16.msra.mxu0 0
    %80 = vmatprep.subr.bf16.mxu0 0
    %81 = vmatpush1.bf16.msra.mxu0 0
    %82 = vmatprep.subr.bf16.mxu0 0
    %83 = vmatpush1.bf16.msra.mxu0 0
    %84 = vmatprep.subr.bf16.mxu0 0
    %85 = vmatpush1.bf16.msra.mxu0 0
    %86 = vmatprep.subr.bf16.mxu0 0
    %87 = vmatpush1.bf16.msra.mxu0 0
    %88 = vmatprep.subr.bf16.mxu0 0
    %89 = vmatpush1.bf16.msra.mxu0 0
    %90 = vmatprep.subr.bf16.mxu0 0
    %91 = vmatpush1.bf16.msra.mxu0 0
    %92 = vmatprep.subr.bf16.mxu0 0
    %93 = vmatpush1.bf16.msra.mxu0 0
    %94 = vmatprep.subr.bf16.mxu0 0
    %95 = vmatpush1.bf16.msra.mxu0 0
    %96 = vmatprep.subr.bf16.mxu0 0
    %97 = vmatpush1.bf16.msra.mxu0 0
    %98 = vmatprep.subr.bf16.mxu0 0
    %99 = vmatpush1.bf16.msra.mxu0 0
    %100 = vmatprep.mubr.bf16.mxu0 0
    %101 = vmatmul.mubr.bf16.gmra.mrb[0].mxu0 %v66
    %v102 = vpop.f32.mrb[0].mxu0
    %v103 = vadd.f32 0.0, %v102
    %v104 = vpop.f32.mrb[0].mxu0
    %v105 = vpop.f32.mrb[0].mxu0
    %v106 = vadd.f32 0.0, %v105
    %v107 = vpop.f32.mrb[0].mxu0
    %108 = vdwg.mxu0
    %v109 = vadd.f32 %v51, %v103
    %v110 = vadd.f32 %v52, %v106
    %111 = vst.msk [vmem:[#allocation2] sm:$0xff] %vm64, %v109
    %112 = vst.msk [vmem:[#allocation2 + $0x8] sm:$0xff] %vm64, %v110
    // Predicated region
    $region26: #{tpu_custom_call.1} parent=1 // pred_check
      %p113 = pneg %p44
    $region27: #{tpu_custom_call.1} parent=1 // pred_check_branch
      %115 = sbr.rel (%p113) target = $region29
    $region28: #{tpu_custom_call.1} parent=1 // pred_region
      %v116 = vld [vmem:[#allocation2] sm:$0xff]
      %v117 = vld [vmem:[#allocation2 + $0x8] sm:$0xff]
      %v118 = vld [vmem:[%s2] sm:$0x1]
      %v120 = vlaneseq
      %v121 = vshrl.u32 %v120, 7
      %v122 = vsub.s32 0, %v121
      %v123 = vrot.slane %v118, %v122
      %v125 = vadd.f32 %v116, %v123
      %v126 = vadd.f32 %v117, %v123
      %v127 = vpack.c.bf16 %v126, %v125
      %v129 = vunpack.c.l.b16 %v127
      %v130 = vunpack.c.h.b16 %v127
      %v131 = vpack.c.b16 %v129, %v129
      %v132 = vpack.c.b16 %v130, %v130
      %vm135 = vcmask 125952
      %136 = vst.msk [vmem:[#allocation8] sm:$0xf] %vm135, %v131
      %137 = vst.msk [vmem:[#allocation8 + $0x4] sm:$0xf] %vm135, %v132
    $region29: #{tpu_custom_call.1} parent=1 // pred_fallthru
      _
    // Predicated region
    $region30: #{tpu_custom_call.1} parent=1 // pred_check
      _
    $region31: #{tpu_custom_call.1} parent=1 // pred_check_branch
      %139 = sbr.rel (0) target = $region33
    $region32: #{tpu_custom_call.1} parent=1 // pred_region
      %s141 = ssub.s32 128, 128
      %142 = vsyncadd [#allocation5], %s141
      %s143 = sshll.u32 [#allocation8], 4
      %s144 = int_to_ptr.vmem [resolvable:$true] %s143
      %149 = dma.vmem_to_hbm [thread:$0]  %s144, 128, %s3, [#allocation5], 64, 64, 4
    $region33: #{tpu_custom_call.1} parent=1 // pred_fallthru
      _
    // Predicated region
    $region34: #{tpu_custom_call.1} parent=1 // pred_check
      _
    $region35: #{tpu_custom_call.1} parent=1 // pred_check_branch
      %151 = sbr.rel (0) target = $region37
    $region36: #{tpu_custom_call.1} parent=1 // pred_region
      %152 = dma.done [#allocation5], 128
    $region37: #{tpu_custom_call.1} parent=1 // pred_fallthru
      _
    %153 = vsyncpa [#allocation4], 1
    %154 = vsyncpa [#allocation7], 1
    %155 = vsyncpa [#allocation5], 1

</llo_original>
